<compile_context>
chip_gen: v5e
topology: v5e:2x2
jax: 0.10.0
libtpu: 0.0.40
codegen_flags: <defaults>
</compile_context>

<pallas_src>
import functools

import jax
import jax.numpy as jnp
import numpy as np
from jax.experimental import pallas as pl
from jax.experimental.pallas import tpu as pltpu

_LANE = 128
_SUBLANE = 8


def _round_up(n, m):
    return (n + m - 1) // m * m


def _vmem_info():
    """Returns (planning budget, physical capacity) in bytes, generation-aware."""
    try:
        cap = int(pltpu.get_tpu_info().vmem_capacity_bytes)
    except Exception:  # pragma: no cover - conservative fallback
        cap = 64 * 1024 * 1024
    if cap >= 96 * 1024 * 1024:          # 128 MiB-class parts (v5e / v6e)
        budget = min(int(0.80 * cap), 104 * 1024 * 1024)
    else:                                # 64 MiB-class parts (v7x per TC)
        budget = min(int(0.75 * cap), 48 * 1024 * 1024)
    return budget, cap


# --------------------------------------------------------------------------
# Fused kernel: full MLP on one (tm, W0) row tile, all layers unrolled.
# --------------------------------------------------------------------------
def _fused_mlp_kernel(*refs, n_layers, exact_gelu, stage_scratch):
    # refs = (x, w0, b0, w1, b1, ..., out[, h_scratch])
    if stage_scratch:
        *refs, h_scr = refs
    x_ref = refs[0]
    o_ref = refs[-1]
    wb = refs[1:-1]

    # Cast activations to the weight dtype so every matmul runs at native MXU
    # rate (bf16 x bf16 when compute_dtype=bf16); accumulate in f32.
    h = x_ref[...].astype(wb[0].dtype)
    for i in range(n_layers):
        w_ref = wb[2 * i]
        b_ref = wb[2 * i + 1]
        acc = jnp.dot(h, w_ref[...], preferred_element_type=jnp.float32)
        acc = acc + b_ref[...]                     # bias pre-stored as f32
        if i != n_layers - 1:
            # Default: tanh GELU -> routed to the otherwise-idle EUP slot.
            # exact_gelu=True keeps torch's default erf GELU for bit-parity.
            acc = jax.nn.gelu(acc, approximate=not exact_gelu)
            nxt_dtype = wb[2 * (i + 1)].dtype
            if stage_scratch:
                # Bound the live range of the intermediate for deep stacks.
                pout = acc.shape[-1]
                h_scr[:, :pout] = acc
                h = h_scr[:, :pout].astype(nxt_dtype)
            else:
                h = acc.astype(nxt_dtype)
        else:
            h = acc
    o_ref[...] = h.astype(o_ref.dtype)


# --------------------------------------------------------------------------
# Fallback kernel: one K/N-tiled Linear (+ optional GELU) with an f32
# accumulator scratch.  Used when the fused resident-weight stack does not
# fit in VMEM (e.g. very wide layers on v7x's 64 MiB).
# --------------------------------------------------------------------------
def _tiled_linear_kernel(x_ref, w_ref, b_ref, o_ref, acc_ref, *,
                         apply_gelu, exact_gelu):
    @pl.when(pl.program_id(2) == 0)
    def _init():
        acc_ref[...] = jnp.zeros_like(acc_ref)

    acc_ref[...] += jnp.dot(x_ref[...], w_ref[...],
                            preferred_element_type=jnp.float32)

    @pl.when(pl.program_id(2) == pl.num_programs(2) - 1)
    def _finalize():
        r = acc_ref[...] + b_ref[...]
        if apply_gelu:
            r = jax.nn.gelu(r, approximate=not exact_gelu)
        o_ref[...] = r.astype(o_ref.dtype)


def _pick_feat_tile(dim, cap=512):
    """Largest multiple-of-128 tile <= cap that divides dim (dim % 128 == 0)."""
    t = min(cap, dim)
    while dim % t != 0:
        t -= _LANE
    return t


def _tiled_linear(h, wp, bp, *, apply_gelu, exact_gelu, out_dtype, tm,
                  vmem_limit):
    Mp, Kp = h.shape
    Np = wp.shape[1]
    tk = _pick_feat_tile(Kp)
    tn = _pick_feat_tile(Np)
    grid = (Mp // tm, Np // tn, Kp // tk)
    return pl.pallas_call(
        functools.partial(_tiled_linear_kernel, apply_gelu=apply_gelu,
                          exact_gelu=exact_gelu),
        out_shape=jax.ShapeDtypeStruct((Mp, Np), out_dtype),
        grid=grid,
        in_specs=[
            pl.BlockSpec((tm, tk), lambda i, j, k: (i, k)),
            pl.BlockSpec((tk, tn), lambda i, j, k: (k, j)),
            pl.BlockSpec((1, tn), lambda i, j, k: (0, j)),
        ],
        out_specs=pl.BlockSpec((tm, tn), lambda i, j, k: (i, j)),
        scratch_shapes=[pltpu.VMEM((tm, tn), jnp.float32)],
        compiler_params=pltpu.CompilerParams(
            dimension_semantics=("parallel", "parallel", "arbitrary"),
            vmem_limit_bytes=vmem_limit,
        ),
    )(h, wp, bp)


# --------------------------------------------------------------------------
# Tiling / VMEM budgeting helpers (fused path).
# --------------------------------------------------------------------------
def _tm_dep_bytes(tm, pwidths, act_itemsize, out_itemsize, stage_scratch):
    b = 2 * tm * pwidths[0] * act_itemsize        # double-buffered input tile
    b += 2 * tm * pwidths[-1] * out_itemsize      # double-buffered output tile
    b += 2 * tm * max(pwidths) * 4                # f32 intermediates headroom
    if stage_scratch:
        b += tm * max(pwidths) * 4                # staging scratch
    return b


def _choose_row_tile(M, pwidths, act_itemsize, out_itemsize, stage_scratch,
                     budget_left, tm_cap):
    tm = min(tm_cap, _round_up(M, _SUBLANE))
    if M >= 256:
        # >= 4 grid steps when there is enough work, so on 2-TensorCore parts
        # (v7x) each core gets >= 2 steps and double-buffered row-tile DMA
        # actually overlaps compute.
        while tm > 128 and pl.cdiv(M, tm) < 4:
            tm = max(128, _round_up(tm // 2, _SUBLANE))
    # Only the tm-dependent terms are tested against the budget left after
    # fixed (single-buffered) weight/bias residency; never go below 128.
    while tm > 128 and _tm_dep_bytes(tm, pwidths, act_itemsize, out_itemsize,
                                     stage_scratch) > budget_left:
        tm = max(128, _round_up(tm // 2, _SUBLANE))
    return tm


# --------------------------------------------------------------------------
# Wrapper: pad, build specs, launch, slice.
# --------------------------------------------------------------------------
def mlp_lifter_forward(x, params, *, exact_gelu=False, compute_dtype=None,
                       out_dtype=None, force_per_layer=False):
    """Forward pass of MLPLifter.

    x:      (..., input_size)
    params: list of (W, b) with W shape (in_i, out_i), b shape (1, out_i).
            GELU is applied after every layer except the last.
    exact_gelu:    True  -> erf GELU (bit-parity with torch F.gelu default)
                   False -> tanh GELU (default; EUP-friendly, faster on TPU)
    compute_dtype: e.g. jnp.bfloat16 to feed the MXU in bf16 (f32 accumulate).
    out_dtype:     output dtype (default: x.dtype).
    """
    lead_shape = x.shape[:-1]
    in_size = x.shape[-1]
    out_size = params[-1][0].shape[1]
    n_layers = len(params)

    if out_dtype is None:
        out_dtype = x.dtype

    M = int(np.prod(lead_shape)) if lead_shape else 1
    h = x.reshape(M, in_size)
    if compute_dtype is not None:
        h = h.astype(compute_dtype)                # halves input DMA for bf16

    widths = [in_size] + [w.shape[1] for (w, _) in params]
    pwidths = [_round_up(wd, _LANE) for wd in widths]   # lane-dense features
    max_pw = max(pwidths)

    w_dtype = (jnp.dtype(compute_dtype) if compute_dtype is not None
               else jnp.dtype(params[0][0].dtype))
    act_itemsize = jnp.dtype(h.dtype).itemsize
    w_itemsize = w_dtype.itemsize
    out_itemsize = jnp.dtype(out_dtype).itemsize

    stage_scratch = n_layers >= 3

    # Fixed residency: single-buffered weights + f32 biases.
    fixed_bytes = sum(pwidths[i] * pwidths[i + 1] * w_itemsize
                      + pwidths[i + 1] * 4 for i in range(n_layers))

    budget, vmem_cap = _vmem_info()
    budget_left = budget - fixed_bytes
    tm_cap = 1024 if (vmem_cap >= 96 * 1024 * 1024 and M >= 1024) else 512

    min_tm = min(128, _round_up(M, _SUBLANE))
    use_per_layer = (force_per_layer
                     or budget_left < _tm_dep_bytes(min_tm, pwidths,
                                                    act_itemsize, out_itemsize,
                                                    stage_scratch))

    def _pad_wb(li, w, b):
        pin, pout = pwidths[li], pwidths[li + 1]
        wp = jnp.pad(w, ((0, pin - w.shape[0]),
                         (0, pout - w.shape[1]))).astype(w_dtype)
        bp = jnp.pad(b.astype(jnp.float32).reshape(1, -1),
                     ((0, 0), (0, pout - b.shape[-1])))
        return wp, bp

    if use_per_layer:
        # --- Fallback: per-layer K/N-tiled matmuls (weights too big to keep
        # resident, e.g. 4k x 4k layers on v7x's 64 MiB VMEM). ---
        tm = min(512, _round_up(M, _SUBLANE))
        Mp = _round_up(M, tm)
        hp = jnp.pad(h, ((0, Mp - M), (0, pwidths[0] - in_size)))
        vmem_limit = int(min(budget, int(vmem_cap * 0.9)))
        for li, (w, b) in enumerate(params):
            wp, bp = _pad_wb(li, w, b)
            is_last = li == n_layers - 1
            hp = _tiled_linear(
                hp, wp, bp,
                apply_gelu=not is_last, exact_gelu=exact_gelu,
                out_dtype=(out_dtype if is_last else w_dtype),
                tm=tm, vmem_limit=vmem_limit)
        out_padded = hp
    else:
        # --- Fused path: whole MLP in one pallas_call, weights resident. ---
        tm = _choose_row_tile(M, pwidths, act_itemsize, out_itemsize,
                              stage_scratch, budget_left, tm_cap)
        Mp = _round_up(M, tm)
        if (Mp, pwidths[0]) != (M, in_size):
            h = jnp.pad(h, ((0, Mp - M), (0, pwidths[0] - in_size)))

        padded_wb = [_pad_wb(li, w, b) for li, (w, b) in enumerate(params)]
        tm_bytes = _tm_dep_bytes(tm, pwidths, act_itemsize, out_itemsize,
                                 stage_scratch)

        def _call(single_buffer_wb):
            flat_inputs = [h]
            in_specs = [pl.BlockSpec((tm, pwidths[0]), lambda i: (i, 0))]
            for li, (wp, bp) in enumerate(padded_wb):
                pin, pout = pwidths[li], pwidths[li + 1]
                if single_buffer_wb:
                    # Constant index_map -> double-buffering buys nothing;
                    # single-buffer to halve resident weight/bias VMEM.
                    w_spec = pl.BlockSpec((pin, pout), lambda i: (0, 0),
                                          pipeline_mode=pl.Buffered(1))
                    b_spec = pl.BlockSpec((1, pout), lambda i: (0, 0),
                                          pipeline_mode=pl.Buffered(1))
                else:
                    w_spec = pl.BlockSpec((pin, pout), lambda i: (0, 0))
                    b_spec = pl.BlockSpec((1, pout), lambda i: (0, 0))
                in_specs += [w_spec, b_spec]
                flat_inputs += [wp, bp]

            scratch = ([pltpu.VMEM((tm, max_pw), jnp.float32)]
                       if stage_scratch else [])
            est = (fixed_bytes if single_buffer_wb else 2 * fixed_bytes) + tm_bytes
            vmem_limit = int(min(max(2 * est, 32 * 1024 * 1024),
                                 int(vmem_cap * 0.9)))
            return pl.pallas_call(
                functools.partial(_fused_mlp_kernel, n_layers=n_layers,
                                  exact_gelu=exact_gelu,
                                  stage_scratch=stage_scratch),
                out_shape=jax.ShapeDtypeStruct((Mp, pwidths[-1]), out_dtype),
                grid=(Mp // tm,),
                in_specs=in_specs,
                out_specs=pl.BlockSpec((tm, pwidths[-1]), lambda i: (i, 0)),
                scratch_shapes=scratch,
                compiler_params=pltpu.CompilerParams(
                    dimension_semantics=("parallel",),
                    vmem_limit_bytes=vmem_limit,
                ),
            )(*flat_inputs)

        try:
            out_padded = _call(True)
        except Exception:
            # pl.Buffered(1) unsupported on this build -> known-good
            # double-buffered weight specs.
            out_padded = _call(False)

    out = out_padded[:M, :out_size]
    return out.reshape(*lead_shape, out_size)


# --------------------------------------------------------------------------
# Parameter init mirroring MLPLifter.__init__ (nn.Linear default init).
# --------------------------------------------------------------------------
def init_mlp_lifter_params(key, input_size, embed_size, inter_sizes=None,
                           dtype=jnp.float32):
    """Weights stored transposed: (in, out); bias (1, out)."""
    if inter_sizes is not None:
        if isinstance(inter_sizes, int):
            sizes = [input_size, inter_sizes]
        else:
            sizes = [input_size] + list(inter_sizes)
        layer_dims = [(sizes[i], sizes[i + 1]) for i in range(len(sizes) - 1)]
        layer_dims.append((sizes[-1], embed_size))
    else:
        layer_dims = [(input_size, embed_size)]

    params = []
    for (fan_in, fan_out) in layer_dims:
        key, kw, kb = jax.random.split(key, 3)
        bound = 1.0 / np.sqrt(fan_in)
        w = jax.random.uniform(kw, (fan_in, fan_out), dtype=dtype,
                               minval=-bound, maxval=bound)
        b = jax.random.uniform(kb, (1, fan_out), dtype=dtype,
                               minval=-bound, maxval=bound)
        params.append((w, b))
    return params


def _reference_forward(x, params, exact_gelu=False):
    """Pure-JAX reference for correctness checking."""
    h = x
    n = len(params)
    for i, (w, b) in enumerate(params):
        h = h @ w + b[0]
        if i != n - 1:
            h = jax.nn.gelu(h, approximate=not exact_gelu)
    return h


if __name__ == "__main__":
    key = jax.random.PRNGKey(0)
    k_x, k_p = jax.random.split(key)

    # Small shapes consistent with the module: x of (batch, seq, input_size).
    batch, seq, input_size = 2, 8, 16
    embed_size = 32
    inter_sizes = [32, 24]   # two hidden Linear layers + final projection

    x = jax.random.normal(k_x, (batch, seq, input_size), dtype=jnp.float32)
    params = init_mlp_lifter_params(k_p, input_size, embed_size, inter_sizes)

    # 1) Fused path, default (tanh) GELU.
    out = jax.block_until_ready(mlp_lifter_forward(x, params))
    ref = _reference_forward(x, params, exact_gelu=False)
    np.testing.assert_allclose(np.asarray(out), np.asarray(ref),
                               rtol=1e-5, atol=1e-5)
    assert out.shape == (batch, seq, embed_size)

    # 2) K/N-tiled per-layer fallback path, exact (erf) GELU (torch parity).
    out_pl = jax.block_until_ready(
        mlp_lifter_forward(x, params, exact_gelu=True, force_per_layer=True))
    ref_e = _reference_forward(x, params, exact_gelu=True)
    np.testing.assert_allclose(np.asarray(out_pl), np.asarray(ref_e),
                               rtol=1e-5, atol=1e-5)

    # 3) bf16 MXU feeding knob (f32 accumulation) — looser tolerance.
    out_bf = jax.block_until_ready(
        mlp_lifter_forward(x, params, compute_dtype=jnp.bfloat16))
    np.testing.assert_allclose(np.asarray(out_bf), np.asarray(ref),
                               rtol=5e-2, atol=5e-2)

    print("KERNEL_OK")
</pallas_src>

<mosaic_0001>
module attributes {stable_mosaic.version = 11 : i64} {
  func.func @_fused_mlp_kernel(%arg0: i32, %arg1: memref<16x128xf32, #tpu.memory_space<vmem>>, %arg2: memref<128x128xf32, #tpu.memory_space<vmem>>, %arg3: memref<1x128xf32, #tpu.memory_space<vmem>>, %arg4: memref<128x128xf32, #tpu.memory_space<vmem>>, %arg5: memref<1x128xf32, #tpu.memory_space<vmem>>, %arg6: memref<128x128xf32, #tpu.memory_space<vmem>>, %arg7: memref<1x128xf32, #tpu.memory_space<vmem>>, %arg8: memref<16x128xf32, #tpu.memory_space<vmem>>, %arg9: memref<16x128xf32, #tpu.memory_space<vmem>>) attributes {dimension_semantics = [#tpu.dimension_semantics<parallel>], iteration_bounds = array<i64: 1>, scalar_prefetch = 0 : i64, scratch_operands = 1 : i64, tpu.core_type = #tpu.core_type<tc>, window_params = [{transform_indices = @transform_0, window_bounds = array<i64: 16, 128>}, {pipeline_mode = #tpu.pipeline_mode<synchronous>, transform_indices = @transform_1, window_bounds = array<i64: 128, 128>}, {pipeline_mode = #tpu.pipeline_mode<synchronous>, transform_indices = @transform_2, window_bounds = array<i64: 1, 128>}, {pipeline_mode = #tpu.pipeline_mode<synchronous>, transform_indices = @transform_3, window_bounds = array<i64: 128, 128>}, {pipeline_mode = #tpu.pipeline_mode<synchronous>, transform_indices = @transform_4, window_bounds = array<i64: 1, 128>}, {pipeline_mode = #tpu.pipeline_mode<synchronous>, transform_indices = @transform_5, window_bounds = array<i64: 128, 128>}, {pipeline_mode = #tpu.pipeline_mode<synchronous>, transform_indices = @transform_6, window_bounds = array<i64: 1, 128>}, {transform_indices = @transform_7, window_bounds = array<i64: 16, 128>}]} {
    %c0 = arith.constant 0 : index
    %c0_0 = arith.constant 0 : index
    %0 = vector.load %arg1[%c0, %c0_0] : memref<16x128xf32, #tpu.memory_space<vmem>>, vector<16x128xf32>
    %c0_1 = arith.constant 0 : index
    %c0_2 = arith.constant 0 : index
    %1 = vector.load %arg2[%c0_1, %c0_2] : memref<128x128xf32, #tpu.memory_space<vmem>>, vector<128x128xf32>
    %cst = arith.constant dense<0.000000e+00> : vector<16x128xf32>
    %2 = tpu.matmul %0, %1, %cst {dimension_numbers = #tpu.dot_dimension_numbers<[1], [0], [0], [1], [0, 0, 1, 1], [], []>} : vector<16x128xf32>, vector<128x128xf32>, vector<16x128xf32> -> vector<16x128xf32>
    %c0_3 = arith.constant 0 : index
    %c0_4 = arith.constant 0 : index
    %3 = vector.load %arg3[%c0_3, %c0_4] : memref<1x128xf32, #tpu.memory_space<vmem>>, vector<1x128xf32>
    %4 = vector.broadcast %3 : vector<1x128xf32> to vector<16x128xf32>
    %5 = arith.addf %2, %4 : vector<16x128xf32>
    %6 = arith.mulf %5, %5 : vector<16x128xf32>
    %7 = arith.mulf %5, %6 : vector<16x128xf32>
    %cst_5 = arith.constant 4.471500e-02 : f32
    %8 = vector.broadcast %cst_5 : f32 to vector<16x128xf32>
    %9 = arith.mulf %8, %7 : vector<16x128xf32>
    %10 = arith.addf %5, %9 : vector<16x128xf32>
    %cst_6 = arith.constant 0.797884583 : f32
    %11 = vector.broadcast %cst_6 : f32 to vector<16x128xf32>
    %12 = arith.mulf %11, %10 : vector<16x128xf32>
    %13 = math.tanh %12 : vector<16x128xf32>
    %cst_7 = arith.constant 1.000000e+00 : f32
    %14 = vector.broadcast %cst_7 : f32 to vector<16x128xf32>
    %15 = arith.addf %14, %13 : vector<16x128xf32>
    %cst_8 = arith.constant 5.000000e-01 : f32
    %16 = vector.broadcast %cst_8 : f32 to vector<16x128xf32>
    %17 = arith.mulf %16, %15 : vector<16x128xf32>
    %18 = arith.mulf %5, %17 : vector<16x128xf32>
    %c0_9 = arith.constant 0 : index
    %c0_10 = arith.constant 0 : index
    %19 = vector.load %arg9[%c0_9, %c0_10] : memref<16x128xf32, #tpu.memory_space<vmem>>, vector<16x128xf32>
    tpu.vector_store %arg9[%c0_9, %c0_10], %18 {strides = array<i32>} : memref<16x128xf32, #tpu.memory_space<vmem>>, vector<16x128xf32>,
    %c0_11 = arith.constant 0 : index
    %c0_12 = arith.constant 0 : index
    %20 = vector.load %arg9[%c0_11, %c0_12] : memref<16x128xf32, #tpu.memory_space<vmem>>, vector<16x128xf32>
    %c0_13 = arith.constant 0 : index
    %c0_14 = arith.constant 0 : index
    %21 = vector.load %arg4[%c0_13, %c0_14] : memref<128x128xf32, #tpu.memory_space<vmem>>, vector<128x128xf32>
    %cst_15 = arith.constant dense<0.000000e+00> : vector<16x128xf32>
    %22 = tpu.matmul %20, %21, %cst_15 {dimension_numbers = #tpu.dot_dimension_numbers<[1], [0], [0], [1], [0, 0, 1, 1], [], []>} : vector<16x128xf32>, vector<128x128xf32>, vector<16x128xf32> -> vector<16x128xf32>
    %c0_16 = arith.constant 0 : index
    %c0_17 = arith.constant 0 : index
    %23 = vector.load %arg5[%c0_16, %c0_17] : memref<1x128xf32, #tpu.memory_space<vmem>>, vector<1x128xf32>
    %24 = vector.broadcast %23 : vector<1x128xf32> to vector<16x128xf32>
    %25 = arith.addf %22, %24 : vector<16x128xf32>
    %26 = arith.mulf %25, %25 : vector<16x128xf32>
    %27 = arith.mulf %25, %26 : vector<16x128xf32>
    %cst_18 = arith.constant 4.471500e-02 : f32
    %28 = vector.broadcast %cst_18 : f32 to vector<16x128xf32>
    %29 = arith.mulf %28, %27 : vector<16x128xf32>
    %30 = arith.addf %25, %29 : vector<16x128xf32>
    %cst_19 = arith.constant 0.797884583 : f32
    %31 = vector.broadcast %cst_19 : f32 to vector<16x128xf32>
    %32 = arith.mulf %31, %30 : vector<16x128xf32>
    %33 = math.tanh %32 : vector<16x128xf32>
    %cst_20 = arith.constant 1.000000e+00 : f32
    %34 = vector.broadcast %cst_20 : f32 to vector<16x128xf32>
    %35 = arith.addf %34, %33 : vector<16x128xf32>
    %cst_21 = arith.constant 5.000000e-01 : f32
    %36 = vector.broadcast %cst_21 : f32 to vector<16x128xf32>
    %37 = arith.mulf %36, %35 : vector<16x128xf32>
    %38 = arith.mulf %25, %37 : vector<16x128xf32>
    %c0_22 = arith.constant 0 : index
    %c0_23 = arith.constant 0 : index
    %39 = vector.load %arg9[%c0_22, %c0_23] : memref<16x128xf32, #tpu.memory_space<vmem>>, vector<16x128xf32>
    tpu.vector_store %arg9[%c0_22, %c0_23], %38 {strides = array<i32>} : memref<16x128xf32, #tpu.memory_space<vmem>>, vector<16x128xf32>,
    %c0_24 = arith.constant 0 : index
    %c0_25 = arith.constant 0 : index
    %40 = vector.load %arg9[%c0_24, %c0_25] : memref<16x128xf32, #tpu.memory_space<vmem>>, vector<16x128xf32>
    %c0_26 = arith.constant 0 : index
    %c0_27 = arith.constant 0 : index
    %41 = vector.load %arg6[%c0_26, %c0_27] : memref<128x128xf32, #tpu.memory_space<vmem>>, vector<128x128xf32>
    %cst_28 = arith.constant dense<0.000000e+00> : vector<16x128xf32>
    %42 = tpu.matmul %40, %41, %cst_28 {dimension_numbers = #tpu.dot_dimension_numbers<[1], [0], [0], [1], [0, 0, 1, 1], [], []>} : vector<16x128xf32>, vector<128x128xf32>, vector<16x128xf32> -> vector<16x128xf32>
    %c0_29 = arith.constant 0 : index
    %c0_30 = arith.constant 0 : index
    %43 = vector.load %arg7[%c0_29, %c0_30] : memref<1x128xf32, #tpu.memory_space<vmem>>, vector<1x128xf32>
    %44 = vector.broadcast %43 : vector<1x128xf32> to vector<16x128xf32>
    %45 = arith.addf %42, %44 : vector<16x128xf32>
    %c0_31 = arith.constant 0 : index
    %c0_32 = arith.constant 0 : index
    %46 = vector.load %arg8[%c0_31, %c0_32] : memref<16x128xf32, #tpu.memory_space<vmem>>, vector<16x128xf32>
    tpu.vector_store %arg8[%c0_31, %c0_32], %45 {strides = array<i32>} : memref<16x128xf32, #tpu.memory_space<vmem>>, vector<16x128xf32>,
    return
  }
  func.func @transform_0(%arg0: i32) -> (i32, i32) {
    %c0_i32 = arith.constant 0 : i32
    %c0_i32_0 = arith.constant 0 : i32
    return %arg0, %c0_i32 : i32, i32
  }
  func.func @transform_1(%arg0: i32) -> (i32, i32) {
    %c0_i32 = arith.constant 0 : i32
    %c0_i32_0 = arith.constant 0 : i32
    %c0_i32_1 = arith.constant 0 : i32
    return %c0_i32, %c0_i32_0 : i32, i32
  }
  func.func @transform_2(%arg0: i32) -> (i32, i32) {
    %c0_i32 = arith.constant 0 : i32
    %c0_i32_0 = arith.constant 0 : i32
    %c0_i32_1 = arith.constant 0 : i32
    return %c0_i32, %c0_i32_0 : i32, i32
  }
  func.func @transform_3(%arg0: i32) -> (i32, i32) {
    %c0_i32 = arith.constant 0 : i32
    %c0_i32_0 = arith.constant 0 : i32
    %c0_i32_1 = arith.constant 0 : i32
    return %c0_i32, %c0_i32_0 : i32, i32
  }
  func.func @transform_4(%arg0: i32) -> (i32, i32) {
    %c0_i32 = arith.constant 0 : i32
    %c0_i32_0 = arith.constant 0 : i32
    %c0_i32_1 = arith.constant 0 : i32
    return %c0_i32, %c0_i32_0 : i32, i32
  }
  func.func @transform_5(%arg0: i32) -> (i32, i32) {
    %c0_i32 = arith.constant 0 : i32
    %c0_i32_0 = arith.constant 0 : i32
    %c0_i32_1 = arith.constant 0 : i32
    return %c0_i32, %c0_i32_0 : i32, i32
  }
  func.func @transform_6(%arg0: i32) -> (i32, i32) {
    %c0_i32 = arith.constant 0 : i32
    %c0_i32_0 = arith.constant 0 : i32
    %c0_i32_1 = arith.constant 0 : i32
    return %c0_i32, %c0_i32_0 : i32, i32
  }
  func.func @transform_7(%arg0: i32) -> (i32, i32) {
    %c0_i32 = arith.constant 0 : i32
    %c0_i32_0 = arith.constant 0 : i32
    return %arg0, %c0_i32 : i32, i32
  }
}

module attributes {stable_mosaic.version = 11 : i64} {
  func.func @_fused_mlp_kernel(%arg0: i32, %arg1: memref<16x128xf32, #tpu.memory_space<vmem>>, %arg2: memref<128x128xf32, #tpu.memory_space<vmem>>, %arg3: memref<1x128xf32, #tpu.memory_space<vmem>>, %arg4: memref<128x128xf32, #tpu.memory_space<vmem>>, %arg5: memref<1x128xf32, #tpu.memory_space<vmem>>, %arg6: memref<128x128xf32, #tpu.memory_space<vmem>>, %arg7: memref<1x128xf32, #tpu.memory_space<vmem>>, %arg8: memref<16x128xf32, #tpu.memory_space<vmem>>, %arg9: memref<16x128xf32, #tpu.memory_space<vmem>>) attributes {dimension_semantics = [#tpu.dimension_semantics<parallel>], iteration_bounds = array<i64: 1>, scalar_prefetch = 0 : i64, scratch_operands = 1 : i64, tpu.core_type = #tpu.core_type<tc>, window_params = [{transform_indices = @transform_0, window_bounds = array<i64: 16, 128>}, {pipeline_mode = #tpu.pipeline_mode<synchronous>, transform_indices = @transform_1, window_bounds = array<i64: 128, 128>}, {pipeline_mode = #tpu.pipeline_mode<synchronous>, transform_indices = @transform_2, window_bounds = array<i64: 1, 128>}, {pipeline_mode = #tpu.pipeline_mode<synchronous>, transform_indices = @transform_3, window_bounds = array<i64: 128, 128>}, {pipeline_mode = #tpu.pipeline_mode<synchronous>, transform_indices = @transform_4, window_bounds = array<i64: 1, 128>}, {pipeline_mode = #tpu.pipeline_mode<synchronous>, transform_indices = @transform_5, window_bounds = array<i64: 128, 128>}, {pipeline_mode = #tpu.pipeline_mode<synchronous>, transform_indices = @transform_6, window_bounds = array<i64: 1, 128>}, {transform_indices = @transform_7, window_bounds = array<i64: 16, 128>}]} {
    %c0 = arith.constant 0 : index
    %c0_0 = arith.constant 0 : index
    %0 = vector.load %arg1[%c0, %c0_0] : memref<16x128xf32, #tpu.memory_space<vmem>>, vector<16x128xf32>
    %c0_1 = arith.constant 0 : index
    %c0_2 = arith.constant 0 : index
    %1 = vector.load %arg2[%c0_1, %c0_2] : memref<128x128xf32, #tpu.memory_space<vmem>>, vector<128x128xf32>
    %cst = arith.constant dense<0.000000e+00> : vector<16x128xf32>
    %2 = tpu.matmul %0, %1, %cst {dimension_numbers = #tpu.dot_dimension_numbers<[1], [0], [0], [1], [0, 0, 1, 1], [], []>} : vector<16x128xf32>, vector<128x128xf32>, vector<16x128xf32> -> vector<16x128xf32>
    %c0_3 = arith.constant 0 : index
    %c0_4 = arith.constant 0 : index
    %3 = vector.load %arg3[%c0_3, %c0_4] : memref<1x128xf32, #tpu.memory_space<vmem>>, vector<1x128xf32>
    %4 = vector.broadcast %3 : vector<1x128xf32> to vector<16x128xf32>
    %5 = arith.addf %2, %4 : vector<16x128xf32>
    %6 = arith.mulf %5, %5 : vector<16x128xf32>
    %7 = arith.mulf %5, %6 : vector<16x128xf32>
    %cst_5 = arith.constant 4.471500e-02 : f32
    %8 = vector.broadcast %cst_5 : f32 to vector<16x128xf32>
    %9 = arith.mulf %8, %7 : vector<16x128xf32>
    %10 = arith.addf %5, %9 : vector<16x128xf32>
    %cst_6 = arith.constant 0.797884583 : f32
    %11 = vector.broadcast %cst_6 : f32 to vector<16x128xf32>
    %12 = arith.mulf %11, %10 : vector<16x128xf32>
    %13 = math.tanh %12 : vector<16x128xf32>
    %cst_7 = arith.constant 1.000000e+00 : f32
    %14 = vector.broadcast %cst_7 : f32 to vector<16x128xf32>
    %15 = arith.addf %14, %13 : vector<16x128xf32>
    %cst_8 = arith.constant 5.000000e-01 : f32
    %16 = vector.broadcast %cst_8 : f32 to vector<16x128xf32>
    %17 = arith.mulf %16, %15 : vector<16x128xf32>
    %18 = arith.mulf %5, %17 : vector<16x128xf32>
    %c0_9 = arith.constant 0 : index
    %c0_10 = arith.constant 0 : index
    %19 = vector.load %arg9[%c0_9, %c0_10] : memref<16x128xf32, #tpu.memory_space<vmem>>, vector<16x128xf32>
    tpu.vector_store %arg9[%c0_9, %c0_10], %18 {strides = array<i32>} : memref<16x128xf32, #tpu.memory_space<vmem>>, vector<16x128xf32>,
    %c0_11 = arith.constant 0 : index
    %c0_12 = arith.constant 0 : index
    %20 = vector.load %arg9[%c0_11, %c0_12] : memref<16x128xf32, #tpu.memory_space<vmem>>, vector<16x128xf32>
    %c0_13 = arith.constant 0 : index
    %c0_14 = arith.constant 0 : index
    %21 = vector.load %arg4[%c0_13, %c0_14] : memref<128x128xf32, #tpu.memory_space<vmem>>, vector<128x128xf32>
    %cst_15 = arith.constant dense<0.000000e+00> : vector<16x128xf32>
    %22 = tpu.matmul %20, %21, %cst_15 {dimension_numbers = #tpu.dot_dimension_numbers<[1], [0], [0], [1], [0, 0, 1, 1], [], []>} : vector<16x128xf32>, vector<128x128xf32>, vector<16x128xf32> -> vector<16x128xf32>
    %c0_16 = arith.constant 0 : index
    %c0_17 = arith.constant 0 : index
    %23 = vector.load %arg5[%c0_16, %c0_17] : memref<1x128xf32, #tpu.memory_space<vmem>>, vector<1x128xf32>
    %24 = vector.broadcast %23 : vector<1x128xf32> to vector<16x128xf32>
    %25 = arith.addf %22, %24 : vector<16x128xf32>
    %26 = arith.mulf %25, %25 : vector<16x128xf32>
    %27 = arith.mulf %25, %26 : vector<16x128xf32>
    %cst_18 = arith.constant 4.471500e-02 : f32
    %28 = vector.broadcast %cst_18 : f32 to vector<16x128xf32>
    %29 = arith.mulf %28, %27 : vector<16x128xf32>
    %30 = arith.addf %25, %29 : vector<16x128xf32>
    %cst_19 = arith.constant 0.797884583 : f32
    %31 = vector.broadcast %cst_19 : f32 to vector<16x128xf32>
    %32 = arith.mulf %31, %30 : vector<16x128xf32>
    %33 = math.tanh %32 : vector<16x128xf32>
    %cst_20 = arith.constant 1.000000e+00 : f32
    %34 = vector.broadcast %cst_20 : f32 to vector<16x128xf32>
    %35 = arith.addf %34, %33 : vector<16x128xf32>
    %cst_21 = arith.constant 5.000000e-01 : f32
    %36 = vector.broadcast %cst_21 : f32 to vector<16x128xf32>
    %37 = arith.mulf %36, %35 : vector<16x128xf32>
    %38 = arith.mulf %25, %37 : vector<16x128xf32>
    %c0_22 = arith.constant 0 : index
    %c0_23 = arith.constant 0 : index
    %39 = vector.load %arg9[%c0_22, %c0_23] : memref<16x128xf32, #tpu.memory_space<vmem>>, vector<16x128xf32>
    tpu.vector_store %arg9[%c0_22, %c0_23], %38 {strides = array<i32>} : memref<16x128xf32, #tpu.memory_space<vmem>>, vector<16x128xf32>,
    %c0_24 = arith.constant 0 : index
    %c0_25 = arith.constant 0 : index
    %40 = vector.load %arg9[%c0_24, %c0_25] : memref<16x128xf32, #tpu.memory_space<vmem>>, vector<16x128xf32>
    %c0_26 = arith.constant 0 : index
    %c0_27 = arith.constant 0 : index
    %41 = vector.load %arg6[%c0_26, %c0_27] : memref<128x128xf32, #tpu.memory_space<vmem>>, vector<128x128xf32>
    %cst_28 = arith.constant dense<0.000000e+00> : vector<16x128xf32>
    %42 = tpu.matmul %40, %41, %cst_28 {dimension_numbers = #tpu.dot_dimension_numbers<[1], [0], [0], [1], [0, 0, 1, 1], [], []>} : vector<16x128xf32>, vector<128x128xf32>, vector<16x128xf32> -> vector<16x128xf32>
    %c0_29 = arith.constant 0 : index
    %c0_30 = arith.constant 0 : index
    %43 = vector.load %arg7[%c0_29, %c0_30] : memref<1x128xf32, #tpu.memory_space<vmem>>, vector<1x128xf32>
    %44 = vector.broadcast %43 : vector<1x128xf32> to vector<16x128xf32>
    %45 = arith.addf %42, %44 : vector<16x128xf32>
    %c0_31 = arith.constant 0 : index
    %c0_32 = arith.constant 0 : index
    %46 = vector.load %arg8[%c0_31, %c0_32] : memref<16x128xf32, #tpu.memory_space<vmem>>, vector<16x128xf32>
    tpu.vector_store %arg8[%c0_31, %c0_32], %45 {strides = array<i32>} : memref<16x128xf32, #tpu.memory_space<vmem>>, vector<16x128xf32>,
    return
  }
  func.func @transform_0(%arg0: i32) -> (i32, i32) {
    %c0_i32 = arith.constant 0 : i32
    %c0_i32_0 = arith.constant 0 : i32
    return %arg0, %c0_i32 : i32, i32
  }
  func.func @transform_1(%arg0: i32) -> (i32, i32) {
    %c0_i32 = arith.constant 0 : i32
    %c0_i32_0 = arith.constant 0 : i32
    %c0_i32_1 = arith.constant 0 : i32
    return %c0_i32, %c0_i32_0 : i32, i32
  }
  func.func @transform_2(%arg0: i32) -> (i32, i32) {
    %c0_i32 = arith.constant 0 : i32
    %c0_i32_0 = arith.constant 0 : i32
    %c0_i32_1 = arith.constant 0 : i32
    return %c0_i32, %c0_i32_0 : i32, i32
  }
  func.func @transform_3(%arg0: i32) -> (i32, i32) {
    %c0_i32 = arith.constant 0 : i32
    %c0_i32_0 = arith.constant 0 : i32
    %c0_i32_1 = arith.constant 0 : i32
    return %c0_i32, %c0_i32_0 : i32, i32
  }
  func.func @transform_4(%arg0: i32) -> (i32, i32) {
    %c0_i32 = arith.constant 0 : i32
    %c0_i32_0 = arith.constant 0 : i32
    %c0_i32_1 = arith.constant 0 : i32
    return %c0_i32, %c0_i32_0 : i32, i32
  }
  func.func @transform_5(%arg0: i32) -> (i32, i32) {
    %c0_i32 = arith.constant 0 : i32
    %c0_i32_0 = arith.constant 0 : i32
    %c0_i32_1 = arith.constant 0 : i32
    return %c0_i32, %c0_i32_0 : i32, i32
  }
  func.func @transform_6(%arg0: i32) -> (i32, i32) {
    %c0_i32 = arith.constant 0 : i32
    %c0_i32_0 = arith.constant 0 : i32
    %c0_i32_1 = arith.constant 0 : i32
    return %c0_i32, %c0_i32_0 : i32, i32
  }
  func.func @transform_7(%arg0: i32) -> (i32, i32) {
    %c0_i32 = arith.constant 0 : i32
    %c0_i32_0 = arith.constant 0 : i32
    return %arg0, %c0_i32 : i32, i32
  }
}

</mosaic_0001>

<llo_original>
// kernel: tpu_custom_call.1
$region0: #{tpu_custom_call.1}
  #allocation0 [shape = 'u32[]', space=smem, size = 0x4, offset = 0x4, fixed_abs, tag = 'smem constant byte address 0x4 - core index']
  #allocation1 [shape = 'u32[72,128]{1,0:T(1,128)}', space=vmem, size = 0x9000, scoped, tag = 'internal scratch']
  #allocation2 [shape = 'f32[16,128]{1,0:T(8,128)}', space=vmem, size = 0x2000, scoped, tag = 'scratch operand']
  %s0 = inlined_call_operand.hbm [shape: f32[16,128], index: 0, kind: input, shape index: {}]
  %s1 = inlined_call_operand.hbm [shape: f32[128,128], index: 1, kind: input, shape index: {}]
  %s2 = inlined_call_operand.vmem [shape: f32[1,128], index: 2, kind: input, shape index: {}]
  %s3 = inlined_call_operand.hbm [shape: f32[128,128], index: 3, kind: input, shape index: {}]
  %s4 = inlined_call_operand.vmem [shape: f32[1,128], index: 4, kind: input, shape index: {}]
  %s5 = inlined_call_operand.hbm [shape: f32[128,128], index: 5, kind: input, shape index: {}]
  %s6 = inlined_call_operand.vmem [shape: f32[1,128], index: 6, kind: input, shape index: {}]
  %s7 = inlined_call_operand.hbm [shape: f32[16,128], index: 7, kind: output, shape index: {}]
  %s8 = sld [smem:[#allocation0]]
  $region54: #{tpu_custom_call.1} parent=0
    _
  %s10 = ssub.s32 1, %s8
  %s11 = scalar_select 0, %s10, %s8
  $region1: #{tpu_custom_call.1} parent=0
    #allocation3 [shape = 'u8[8192]{0}', space=vmem, size = 0x2000, scoped, tag = 'input window, operand 0, single buffered']
    #allocation4 [shape = 's32[1]{0}', space=sflag, size = 0x4, scoped, tag = 'scoped memory for tpu_custom_call.1']
    #allocation5 [shape = 's32[1]{0}', space=sflag, size = 0x4, scoped, tag = 'scoped memory for tpu_custom_call.1']
    #allocation6 [shape = 'u8[65536]{0}', space=vmem, size = 0x10000, scoped, tag = 'input window, operand 1, single buffered']
    #allocation7 [shape = 's32[1]{0}', space=sflag, size = 0x4, scoped, tag = 'scoped memory for tpu_custom_call.1']
    #allocation8 [shape = 'u8[65536]{0}', space=vmem, size = 0x10000, scoped, tag = 'input window, operand 3, single buffered']
    #allocation9 [shape = 'u8[65536]{0}', space=vmem, size = 0x10000, scoped, tag = 'input window, operand 5, single buffered']
    #allocation10 [shape = 's32[1]{0}', space=sflag, size = 0x4, scoped, tag = 'scoped memory for tpu_custom_call.1']
    #allocation11 [shape = 'u8[8192]{0}', space=vmem, size = 0x2000, scoped, tag = 'output window, operand 0, single buffered']
    %12 = vsyncpa [#allocation4], 0
    %13 = vsyncpa [#allocation7], 0
    %14 = vsyncpa [#allocation10], 0
    %15 = vsyncpa [#allocation5], 0
    // Predicated region
    $region2: #{tpu_custom_call.1} parent=1 // pred_check
      _
    $region3: #{tpu_custom_call.1} parent=1 // pred_check_branch
      %17 = sbr.rel (0) target = $region5
    $region4: #{tpu_custom_call.1} parent=1 // pred_region
      %19 = vsyncadd [#allocation4], 0
      %s20 = sshll.u32 %s0, 4
      %s21 = int_to_ptr.hbm [resolvable:$true] %s20
      %s22 = sshll.u32 [#allocation3], 4
      %s23 = int_to_ptr.vmem [resolvable:$true] %s22
      %28 = dma.hbm_to_vmem [thread:$0]  %s21, 256, %s23, [#allocation4], 128, 128, 8
    $region5: #{tpu_custom_call.1} parent=1 // pred_fallthru
      _
    // Predicated region
    $region6: #{tpu_custom_call.1} parent=1 // pred_check
      _
    $region7: #{tpu_custom_call.1} parent=1 // pred_check_branch
      %30 = sbr.rel (0) target = $region9
    $region8: #{tpu_custom_call.1} parent=1 // pred_region
      %32 = vsyncadd [#allocation7], 0
      %s33 = sshll.u32 %s1, 4
      %s34 = int_to_ptr.hbm [resolvable:$true] %s33
      %s35 = sshll.u32 [#allocation6], 4
      %s36 = int_to_ptr.vmem [resolvable:$true] %s35
      %41 = dma.hbm_to_vmem [thread:$0]  %s34, 2048, %s36, [#allocation7], 128, 128, 8
    $region9: #{tpu_custom_call.1} parent=1 // pred_fallthru
      _
    // Predicated region
    $region10: #{tpu_custom_call.1} parent=1 // pred_check
      _
    $region11: #{tpu_custom_call.1} parent=1 // pred_check_branch
      %43 = sbr.rel (0) target = $region13
    $region12: #{tpu_custom_call.1} parent=1 // pred_region
      _
    $region13: #{tpu_custom_call.1} parent=1 // pred_fallthru
      _
    // Predicated region
    $region14: #{tpu_custom_call.1} parent=1 // pred_check
      _
    $region15: #{tpu_custom_call.1} parent=1 // pred_check_branch
      %45 = sbr.rel (0) target = $region17
    $region16: #{tpu_custom_call.1} parent=1 // pred_region
      %47 = vsyncadd [#allocation7], 0
      %s48 = sshll.u32 %s3, 4
      %s49 = int_to_ptr.hbm [resolvable:$true] %s48
      %s50 = sshll.u32 [#allocation8], 4
      %s51 = int_to_ptr.vmem [resolvable:$true] %s50
      %56 = dma.hbm_to_vmem [thread:$0]  %s49, 2048, %s51, [#allocation7], 128, 128, 8
    $region17: #{tpu_custom_call.1} parent=1 // pred_fallthru
      _
    // Predicated region
    $region18: #{tpu_custom_call.1} parent=1 // pred_check
      _
    $region19: #{tpu_custom_call.1} parent=1 // pred_check_branch
      %58 = sbr.rel (0) target = $region21
    $region20: #{tpu_custom_call.1} parent=1 // pred_region
      _
    $region21: #{tpu_custom_call.1} parent=1 // pred_fallthru
      _
    // Predicated region
    $region22: #{tpu_custom_call.1} parent=1 // pred_check
      _
    $region23: #{tpu_custom_call.1} parent=1 // pred_check_branch
      %60 = sbr.rel (0) target = $region25
    $region24: #{tpu_custom_call.1} parent=1 // pred_region
      %62 = vsyncadd [#allocation10], 0
      %s63 = sshll.u32 %s5, 4
      %s64 = int_to_ptr.hbm [resolvable:$true] %s63
      %s65 = sshll.u32 [#allocation9], 4
      %s66 = int_to_ptr.vmem [resolvable:$true] %s65
      %71 = dma.hbm_to_vmem [thread:$0]  %s64, 2048, %s66, [#allocation10], 128, 128, 8
    $region25: #{tpu_custom_call.1} parent=1 // pred_fallthru
      _
    // Predicated region
    $region26: #{tpu_custom_call.1} parent=1 // pred_check
      _
    $region27: #{tpu_custom_call.1} parent=1 // pred_check_branch
      %73 = sbr.rel (0) target = $region29
    $region28: #{tpu_custom_call.1} parent=1 // pred_region
      _
    $region29: #{tpu_custom_call.1} parent=1 // pred_fallthru
      _
    // Predicated region
    $region30: #{tpu_custom_call.1} parent=1 // pred_check
      _
    $region31: #{tpu_custom_call.1} parent=1 // pred_check_branch
      %75 = sbr.rel (0) target = $region33
    $region32: #{tpu_custom_call.1} parent=1 // pred_region
      %77 = dma.done [#allocation4], 256
    $region33: #{tpu_custom_call.1} parent=1 // pred_fallthru
      _
    // Predicated region
    $region34: #{tpu_custom_call.1} parent=1 // pred_check
      _
    $region35: #{tpu_custom_call.1} parent=1 // pred_check_branch
      %79 = sbr.rel (0) target = $region37
    $region36: #{tpu_custom_call.1} parent=1 // pred_region
      %81 = dma.done [#allocation7], 2048
    $region37: #{tpu_custom_call.1} parent=1 // pred_fallthru
      _
    // Predicated region
    $region38: #{tpu_custom_call.1} parent=1 // pred_check
      _
    $region39: #{tpu_custom_call.1} parent=1 // pred_check_branch
      %83 = sbr.rel (0) target = $region41
    $region40: #{tpu_custom_call.1} parent=1 // pred_region
      %85 = dma.done [#allocation7], 2048
    $region41: #{tpu_custom_call.1} parent=1 // pred_fallthru
      _
    // Predicated region
    $region42: #{tpu_custom_call.1} parent=1 // pred_check
      _
    $region43: #{tpu_custom_call.1} parent=1 // pred_check_branch
      %87 = sbr.rel (0) target = $region45
    $region44: #{tpu_custom_call.1} parent=1 // pred_region
      %89 = dma.done [#allocation10], 2048
    $region45: #{tpu_custom_call.1} parent=1 // pred_fallthru
      _
    %v90 = vld [vmem:[#allocation3] sm:$0xff]
    %v91 = vld [vmem:[#allocation3 + $0x8] sm:$0xff]
    %v92 = vld [vmem:[#allocation6] sm:$0xff]
    %v93 = vld [vmem:[#allocation6 + $0x8] sm:$0xff]
    %v94 = vld [vmem:[#allocation6 + $0x10] sm:$0xff]
    %v95 = vld [vmem:[#allocation6 + $0x18] sm:$0xff]
    %v96 = vld [vmem:[#allocation6 + $0x20] sm:$0xff]
    %v97 = vld [vmem:[#allocation6 + $0x28] sm:$0xff]
    %v98 = vld [vmem:[#allocation6 + $0x30] sm:$0xff]
    %v99 = vld [vmem:[#allocation6 + $0x38] sm:$0xff]
    %v100 = vld [vmem:[#allocation6 + $0x40] sm:$0xff]
    %v101 = vld [vmem:[#allocation6 + $0x48] sm:$0xff]
    %v102 = vld [vmem:[#allocation6 + $0x50] sm:$0xff]
    %v103 = vld [vmem:[#allocation6 + $0x58] sm:$0xff]
    %v104 = vld [vmem:[#allocation6 + $0x60] sm:$0xff]
    %v105 = vld [vmem:[#allocation6 + $0x68] sm:$0xff]
    %v106 = vld [vmem:[#allocation6 + $0x70] sm:$0xff]
    %v107 = vld [vmem:[#allocation6 + $0x78] sm:$0xff]
    %v108 = vld [vmem:[%s2] sm:$0x1]
    %v110 = vperm.slane %v108, 0
    %112 = vmatpush.msra.mxu0 %v107
    %113 = vmatpush.msra.mxu0 %v106
    %114 = vmatpush.msra.mxu0 %v105
    %115 = vmatpush.msra.mxu0 %v104
    %116 = vmatpush.msra.mxu0 %v103
    %117 = vmatpush.msra.mxu0 %v102
    %118 = vmatpush.msra.mxu0 %v101
    %119 = vmatpush.msra.mxu0 %v100
    %120 = vmatpush.msra.mxu0 %v99
    %121 = vmatpush.msra.mxu0 %v98
    %122 = vmatpush.msra.mxu0 %v97
    %123 = vmatpush.msra.mxu0 %v96
    %124 = vmatpush.msra.mxu0 %v95
    %125 = vmatpush.msra.mxu0 %v94
    %126 = vmatpush.msra.mxu0 %v93
    %127 = vmatpush.msra.mxu0 %v92
    %128 = vmatmul.f32.gmra.mxu0 %v90
    %v129 = vpop.f32.mrf.mxu0
    %v130 = vadd.f32 %v110, %v129
    %131 = vmatmul.f32.gmra.mxu0 %v91
    %v132 = vpop.f32.mrf.mxu0
    %v133 = vadd.f32 %v110, %v132
    %134 = vdwg.mxu0
    %v135 = vmul.f32 %v130, %v130
    %v136 = vmul.f32 %v133, %v133
    %v137 = vmul.f32 %v130, %v135
    %v138 = vmul.f32 %v133, %v136
    %v139 = vmul.f32 %v137, 0.044715
    %v140 = vmul.f32 %v138, 0.044715
    %v141 = vadd.f32 %v130, %v139
    %v142 = vadd.f32 %v133, %v140
    %v143 = vmul.f32 %v141, 0.7978846
    %v144 = vmul.f32 %v142, 0.7978846
    %v145 = vtanh.pop %v143
    %v146 = vtanh.pop %v144
    %v147 = vadd.f32 %v145, 1.0
    %v148 = vadd.f32 %v146, 1.0
    %v149 = vmul.f32 %v147, 0.5
    %v150 = vmul.f32 %v148, 0.5
    %v151 = vmul.f32 %v130, %v149
    %v152 = vmul.f32 %v133, %v150
    %153 = vst [vmem:[#allocation2] sm:$0xff] %v151
    %154 = vst [vmem:[#allocation2 + $0x8] sm:$0xff] %v152
    %v155 = vld [vmem:[#allocation2] sm:$0xff]
    %v156 = vld [vmem:[#allocation2 + $0x8] sm:$0xff]
    %v157 = vld [vmem:[#allocation8] sm:$0xff]
    %v158 = vld [vmem:[#allocation8 + $0x8] sm:$0xff]
    %v159 = vld [vmem:[#allocation8 + $0x10] sm:$0xff]
    %v160 = vld [vmem:[#allocation8 + $0x18] sm:$0xff]
    %v161 = vld [vmem:[#allocation8 + $0x20] sm:$0xff]
    %v162 = vld [vmem:[#allocation8 + $0x28] sm:$0xff]
    %v163 = vld [vmem:[#allocation8 + $0x30] sm:$0xff]
    %v164 = vld [vmem:[#allocation8 + $0x38] sm:$0xff]
    %v165 = vld [vmem:[#allocation8 + $0x40] sm:$0xff]
    %v166 = vld [vmem:[#allocation8 + $0x48] sm:$0xff]
    %v167 = vld [vmem:[#allocation8 + $0x50] sm:$0xff]
    %v168 = vld [vmem:[#allocation8 + $0x58] sm:$0xff]
    %v169 = vld [vmem:[#allocation8 + $0x60] sm:$0xff]
    %v170 = vld [vmem:[#allocation8 + $0x68] sm:$0xff]
    %v171 = vld [vmem:[#allocation8 + $0x70] sm:$0xff]
    %v172 = vld [vmem:[#allocation8 + $0x78] sm:$0xff]
    %v173 = vld [vmem:[%s4] sm:$0x1]
    %v175 = vperm.slane %v173, 0
    %177 = vmatpush.msra.mxu0 %v172
    %178 = vmatpush.msra.mxu0 %v171
    %179 = vmatpush.msra.mxu0 %v170
    %180 = vmatpush.msra.mxu0 %v169
    %181 = vmatpush.msra.mxu0 %v168
    %182 = vmatpush.msra.mxu0 %v167
    %183 = vmatpush.msra.mxu0 %v166
    %184 = vmatpush.msra.mxu0 %v165
    %185 = vmatpush.msra.mxu0 %v164
    %186 = vmatpush.msra.mxu0 %v163
    %187 = vmatpush.msra.mxu0 %v162
    %188 = vmatpush.msra.mxu0 %v161
    %189 = vmatpush.msra.mxu0 %v160
    %190 = vmatpush.msra.mxu0 %v159
    %191 = vmatpush.msra.mxu0 %v158
    %192 = vmatpush.msra.mxu0 %v157
    %193 = vmatmul.f32.gmra.mxu0 %v155
    %v194 = vpop.f32.mrf.mxu0
    %v195 = vadd.f32 %v175, %v194
    %196 = vmatmul.f32.gmra.mxu0 %v156
    %v197 = vpop.f32.mrf.mxu0
    %v198 = vadd.f32 %v175, %v197
    %199 = vdwg.mxu0
    %v200 = vmul.f32 %v195, %v195
    %v201 = vmul.f32 %v198, %v198
    %v202 = vmul.f32 %v195, %v200
    %v203 = vmul.f32 %v198, %v201
    %v204 = vmul.f32 %v202, 0.044715
    %v205 = vmul.f32 %v203, 0.044715
    %v206 = vadd.f32 %v195, %v204
    %v207 = vadd.f32 %v198, %v205
    %v208 = vmul.f32 %v206, 0.7978846
    %v209 = vmul.f32 %v207, 0.7978846
    %v210 = vtanh.pop %v208
    %v211 = vtanh.pop %v209
    %v212 = vadd.f32 %v210, 1.0
    %v213 = vadd.f32 %v211, 1.0
    %v214 = vmul.f32 %v212, 0.5
    %v215 = vmul.f32 %v213, 0.5
    %v216 = vmul.f32 %v195, %v214
    %v217 = vmul.f32 %v198, %v215
    %218 = vst [vmem:[#allocation2] sm:$0xff] %v216
    %219 = vst [vmem:[#allocation2 + $0x8] sm:$0xff] %v217
    %v220 = vld [vmem:[#allocation2] sm:$0xff]
    %v221 = vld [vmem:[#allocation2 + $0x8] sm:$0xff]
    %v222 = vld [vmem:[#allocation9] sm:$0xff]
    %v223 = vld [vmem:[#allocation9 + $0x8] sm:$0xff]
    %v224 = vld [vmem:[#allocation9 + $0x10] sm:$0xff]
    %v225 = vld [vmem:[#allocation9 + $0x18] sm:$0xff]
    %v226 = vld [vmem:[#allocation9 + $0x20] sm:$0xff]
    %v227 = vld [vmem:[#allocation9 + $0x28] sm:$0xff]
    %v228 = vld [vmem:[#allocation9 + $0x30] sm:$0xff]
    %v229 = vld [vmem:[#allocation9 + $0x38] sm:$0xff]
    %v230 = vld [vmem:[#allocation9 + $0x40] sm:$0xff]
    %v231 = vld [vmem:[#allocation9 + $0x48] sm:$0xff]
    %v232 = vld [vmem:[#allocation9 + $0x50] sm:$0xff]
    %v233 = vld [vmem:[#allocation9 + $0x58] sm:$0xff]
    %v234 = vld [vmem:[#allocation9 + $0x60] sm:$0xff]
    %v235 = vld [vmem:[#allocation9 + $0x68] sm:$0xff]
    %v236 = vld [vmem:[#allocation9 + $0x70] sm:$0xff]
    %v237 = vld [vmem:[#allocation9 + $0x78] sm:$0xff]
    %v238 = vld [vmem:[%s6] sm:$0x1]
    %v240 = vperm.slane %v238, 0
    %242 = vmatpush.msra.mxu0 %v237
    %243 = vmatpush.msra.mxu0 %v236
    %244 = vmatpush.msra.mxu0 %v235
    %245 = vmatpush.msra.mxu0 %v234
    %246 = vmatpush.msra.mxu0 %v233
    %247 = vmatpush.msra.mxu0 %v232
    %248 = vmatpush.msra.mxu0 %v231
    %249 = vmatpush.msra.mxu0 %v230
    %250 = vmatpush.msra.mxu0 %v229
    %251 = vmatpush.msra.mxu0 %v228
    %252 = vmatpush.msra.mxu0 %v227
    %253 = vmatpush.msra.mxu0 %v226
    %254 = vmatpush.msra.mxu0 %v225
    %255 = vmatpush.msra.mxu0 %v224
    %256 = vmatpush.msra.mxu0 %v223
    %257 = vmatpush.msra.mxu0 %v222
    %258 = vmatmul.f32.gmra.mxu0 %v220
    %v259 = vpop.f32.mrf.mxu0
    %v260 = vadd.f32 %v240, %v259
    %261 = vmatmul.f32.gmra.mxu0 %v221
    %v262 = vpop.f32.mrf.mxu0
    %v263 = vadd.f32 %v240, %v262
    %264 = vdwg.mxu0
    %265 = vst [vmem:[#allocation11] sm:$0xff] %v260
    %266 = vst [vmem:[#allocation11 + $0x8] sm:$0xff] %v263
    // Predicated region
    $region46: #{tpu_custom_call.1} parent=1 // pred_check
      _
    $region47: #{tpu_custom_call.1} parent=1 // pred_check_branch
      %268 = sbr.rel (0) target = $region49
    $region48: #{tpu_custom_call.1} parent=1 // pred_region
      %270 = vsyncadd [#allocation5], 0
      %s271 = sshll.u32 [#allocation11], 4
      %s272 = int_to_ptr.vmem [resolvable:$true] %s271
      %s273 = sshll.u32 %s7, 4
      %s274 = int_to_ptr.hbm [resolvable:$true] %s273
      %279 = dma.vmem_to_hbm [thread:$0]  %s272, 256, %s274, [#allocation5], 128, 128, 8
    $region49: #{tpu_custom_call.1} parent=1 // pred_fallthru
      _
    // Predicated region
    $region50: #{tpu_custom_call.1} parent=1 // pred_check
      _
    $region51: #{tpu_custom_call.1} parent=1 // pred_check_branch
      %281 = sbr.rel (0) target = $region53
    $region52: #{tpu_custom_call.1} parent=1 // pred_region
      %283 = dma.done [#allocation5], 256
    $region53: #{tpu_custom_call.1} parent=1 // pred_fallthru
      _
    %284 = vsyncpa [#allocation4], 1
    %285 = vsyncpa [#allocation7], 1
    %286 = vsyncpa [#allocation10], 1
    %287 = vsyncpa [#allocation5], 1

// kernel: tpu_custom_call.1
$region0: #{tpu_custom_call.1}
  #allocation0 [shape = 'u32[]', space=smem, size = 0x4, offset = 0x4, fixed_abs, tag = 'smem constant byte address 0x4 - core index']
  #allocation1 [shape = 'u32[72,128]{1,0:T(1,128)}', space=vmem, size = 0x9000, scoped, tag = 'internal scratch']
  #allocation2 [shape = 'f32[16,128]{1,0:T(8,128)}', space=vmem, size = 0x2000, scoped, tag = 'scratch operand']
  %s0 = inlined_call_operand.hbm [shape: f32[16,128], index: 0, kind: input, shape index: {}]
  %s1 = inlined_call_operand.hbm [shape: f32[128,128], index: 1, kind: input, shape index: {}]
  %s2 = inlined_call_operand.vmem [shape: f32[1,128], index: 2, kind: input, shape index: {}]
  %s3 = inlined_call_operand.hbm [shape: f32[128,128], index: 3, kind: input, shape index: {}]
  %s4 = inlined_call_operand.vmem [shape: f32[1,128], index: 4, kind: input, shape index: {}]
  %s5 = inlined_call_operand.hbm [shape: f32[128,128], index: 5, kind: input, shape index: {}]
  %s6 = inlined_call_operand.vmem [shape: f32[1,128], index: 6, kind: input, shape index: {}]
  %s7 = inlined_call_operand.hbm [shape: f32[16,128], index: 7, kind: output, shape index: {}]
  %s8 = sld [smem:[#allocation0]]
  $region54: #{tpu_custom_call.1} parent=0
    _
  %s10 = ssub.s32 1, %s8
  %s11 = scalar_select 0, %s10, %s8
  $region1: #{tpu_custom_call.1} parent=0
    #allocation3 [shape = 'u8[8192]{0}', space=vmem, size = 0x2000, scoped, tag = 'input window, operand 0, single buffered']
    #allocation4 [shape = 's32[1]{0}', space=sflag, size = 0x4, scoped, tag = 'scoped memory for tpu_custom_call.1']
    #allocation5 [shape = 's32[1]{0}', space=sflag, size = 0x4, scoped, tag = 'scoped memory for tpu_custom_call.1']
    #allocation6 [shape = 'u8[65536]{0}', space=vmem, size = 0x10000, scoped, tag = 'input window, operand 1, single buffered']
    #allocation7 [shape = 's32[1]{0}', space=sflag, size = 0x4, scoped, tag = 'scoped memory for tpu_custom_call.1']
    #allocation8 [shape = 'u8[65536]{0}', space=vmem, size = 0x10000, scoped, tag = 'input window, operand 3, single buffered']
    #allocation9 [shape = 'u8[65536]{0}', space=vmem, size = 0x10000, scoped, tag = 'input window, operand 5, single buffered']
    #allocation10 [shape = 's32[1]{0}', space=sflag, size = 0x4, scoped, tag = 'scoped memory for tpu_custom_call.1']
    #allocation11 [shape = 'u8[8192]{0}', space=vmem, size = 0x2000, scoped, tag = 'output window, operand 0, single buffered']
    %12 = vsyncpa [#allocation4], 0
    %13 = vsyncpa [#allocation7], 0
    %14 = vsyncpa [#allocation10], 0
    %15 = vsyncpa [#allocation5], 0
    // Predicated region
    $region2: #{tpu_custom_call.1} parent=1 // pred_check
      _
    $region3: #{tpu_custom_call.1} parent=1 // pred_check_branch
      %17 = sbr.rel (0) target = $region5
    $region4: #{tpu_custom_call.1} parent=1 // pred_region
      %19 = vsyncadd [#allocation4], 0
      %s20 = sshll.u32 %s0, 4
      %s21 = int_to_ptr.hbm [resolvable:$true] %s20
      %s22 = sshll.u32 [#allocation3], 4
      %s23 = int_to_ptr.vmem [resolvable:$true] %s22
      %28 = dma.hbm_to_vmem [thread:$0]  %s21, 256, %s23, [#allocation4], 128, 128, 8
    $region5: #{tpu_custom_call.1} parent=1 // pred_fallthru
      _
    // Predicated region
    $region6: #{tpu_custom_call.1} parent=1 // pred_check
      _
    $region7: #{tpu_custom_call.1} parent=1 // pred_check_branch
      %30 = sbr.rel (0) target = $region9
    $region8: #{tpu_custom_call.1} parent=1 // pred_region
      %32 = vsyncadd [#allocation7], 0
      %s33 = sshll.u32 %s1, 4
      %s34 = int_to_ptr.hbm [resolvable:$true] %s33
      %s35 = sshll.u32 [#allocation6], 4
      %s36 = int_to_ptr.vmem [resolvable:$true] %s35
      %41 = dma.hbm_to_vmem [thread:$0]  %s34, 2048, %s36, [#allocation7], 128, 128, 8
    $region9: #{tpu_custom_call.1} parent=1 // pred_fallthru
      _
    // Predicated region
    $region10: #{tpu_custom_call.1} parent=1 // pred_check
      _
    $region11: #{tpu_custom_call.1} parent=1 // pred_check_branch
      %43 = sbr.rel (0) target = $region13
    $region12: #{tpu_custom_call.1} parent=1 // pred_region
      _
    $region13: #{tpu_custom_call.1} parent=1 // pred_fallthru
      _
    // Predicated region
    $region14: #{tpu_custom_call.1} parent=1 // pred_check
      _
    $region15: #{tpu_custom_call.1} parent=1 // pred_check_branch
      %45 = sbr.rel (0) target = $region17
    $region16: #{tpu_custom_call.1} parent=1 // pred_region
      %47 = vsyncadd [#allocation7], 0
      %s48 = sshll.u32 %s3, 4
      %s49 = int_to_ptr.hbm [resolvable:$true] %s48
      %s50 = sshll.u32 [#allocation8], 4
      %s51 = int_to_ptr.vmem [resolvable:$true] %s50
      %56 = dma.hbm_to_vmem [thread:$0]  %s49, 2048, %s51, [#allocation7], 128, 128, 8
    $region17: #{tpu_custom_call.1} parent=1 // pred_fallthru
      _
    // Predicated region
    $region18: #{tpu_custom_call.1} parent=1 // pred_check
      _
    $region19: #{tpu_custom_call.1} parent=1 // pred_check_branch
      %58 = sbr.rel (0) target = $region21
    $region20: #{tpu_custom_call.1} parent=1 // pred_region
      _
    $region21: #{tpu_custom_call.1} parent=1 // pred_fallthru
      _
    // Predicated region
    $region22: #{tpu_custom_call.1} parent=1 // pred_check
      _
    $region23: #{tpu_custom_call.1} parent=1 // pred_check_branch
      %60 = sbr.rel (0) target = $region25
    $region24: #{tpu_custom_call.1} parent=1 // pred_region
      %62 = vsyncadd [#allocation10], 0
      %s63 = sshll.u32 %s5, 4
      %s64 = int_to_ptr.hbm [resolvable:$true] %s63
      %s65 = sshll.u32 [#allocation9], 4
      %s66 = int_to_ptr.vmem [resolvable:$true] %s65
      %71 = dma.hbm_to_vmem [thread:$0]  %s64, 2048, %s66, [#allocation10], 128, 128, 8
    $region25: #{tpu_custom_call.1} parent=1 // pred_fallthru
      _
    // Predicated region
    $region26: #{tpu_custom_call.1} parent=1 // pred_check
      _
    $region27: #{tpu_custom_call.1} parent=1 // pred_check_branch
      %73 = sbr.rel (0) target = $region29
    $region28: #{tpu_custom_call.1} parent=1 // pred_region
      _
    $region29: #{tpu_custom_call.1} parent=1 // pred_fallthru
      _
    // Predicated region
    $region30: #{tpu_custom_call.1} parent=1 // pred_check
      _
    $region31: #{tpu_custom_call.1} parent=1 // pred_check_branch
      %75 = sbr.rel (0) target = $region33
    $region32: #{tpu_custom_call.1} parent=1 // pred_region
      %77 = dma.done [#allocation4], 256
    $region33: #{tpu_custom_call.1} parent=1 // pred_fallthru
      _
    // Predicated region
    $region34: #{tpu_custom_call.1} parent=1 // pred_check
      _
    $region35: #{tpu_custom_call.1} parent=1 // pred_check_branch
      %79 = sbr.rel (0) target = $region37
    $region36: #{tpu_custom_call.1} parent=1 // pred_region
      %81 = dma.done [#allocation7], 2048
    $region37: #{tpu_custom_call.1} parent=1 // pred_fallthru
      _
    // Predicated region
    $region38: #{tpu_custom_call.1} parent=1 // pred_check
      _
    $region39: #{tpu_custom_call.1} parent=1 // pred_check_branch
      %83 = sbr.rel (0) target = $region41
    $region40: #{tpu_custom_call.1} parent=1 // pred_region
      %85 = dma.done [#allocation7], 2048
    $region41: #{tpu_custom_call.1} parent=1 // pred_fallthru
      _
    // Predicated region
    $region42: #{tpu_custom_call.1} parent=1 // pred_check
      _
    $region43: #{tpu_custom_call.1} parent=1 // pred_check_branch
      %87 = sbr.rel (0) target = $region45
    $region44: #{tpu_custom_call.1} parent=1 // pred_region
      %89 = dma.done [#allocation10], 2048
    $region45: #{tpu_custom_call.1} parent=1 // pred_fallthru
      _
    %v90 = vld [vmem:[#allocation3] sm:$0xff]
    %v91 = vld [vmem:[#allocation3 + $0x8] sm:$0xff]
    %v92 = vld [vmem:[#allocation6] sm:$0xff]
    %v93 = vld [vmem:[#allocation6 + $0x8] sm:$0xff]
    %v94 = vld [vmem:[#allocation6 + $0x10] sm:$0xff]
    %v95 = vld [vmem:[#allocation6 + $0x18] sm:$0xff]
    %v96 = vld [vmem:[#allocation6 + $0x20] sm:$0xff]
    %v97 = vld [vmem:[#allocation6 + $0x28] sm:$0xff]
    %v98 = vld [vmem:[#allocation6 + $0x30] sm:$0xff]
    %v99 = vld [vmem:[#allocation6 + $0x38] sm:$0xff]
    %v100 = vld [vmem:[#allocation6 + $0x40] sm:$0xff]
    %v101 = vld [vmem:[#allocation6 + $0x48] sm:$0xff]
    %v102 = vld [vmem:[#allocation6 + $0x50] sm:$0xff]
    %v103 = vld [vmem:[#allocation6 + $0x58] sm:$0xff]
    %v104 = vld [vmem:[#allocation6 + $0x60] sm:$0xff]
    %v105 = vld [vmem:[#allocation6 + $0x68] sm:$0xff]
    %v106 = vld [vmem:[#allocation6 + $0x70] sm:$0xff]
    %v107 = vld [vmem:[#allocation6 + $0x78] sm:$0xff]
    %v108 = vld [vmem:[%s2] sm:$0x1]
    %v110 = vperm.slane %v108, 0
    %112 = vmatpush.msra.mxu0 %v107
    %113 = vmatpush.msra.mxu0 %v106
    %114 = vmatpush.msra.mxu0 %v105
    %115 = vmatpush.msra.mxu0 %v104
    %116 = vmatpush.msra.mxu0 %v103
    %117 = vmatpush.msra.mxu0 %v102
    %118 = vmatpush.msra.mxu0 %v101
    %119 = vmatpush.msra.mxu0 %v100
    %120 = vmatpush.msra.mxu0 %v99
    %121 = vmatpush.msra.mxu0 %v98
    %122 = vmatpush.msra.mxu0 %v97
    %123 = vmatpush.msra.mxu0 %v96
    %124 = vmatpush.msra.mxu0 %v95
    %125 = vmatpush.msra.mxu0 %v94
    %126 = vmatpush.msra.mxu0 %v93
    %127 = vmatpush.msra.mxu0 %v92
    %128 = vmatmul.f32.gmra.mxu0 %v90
    %v129 = vpop.f32.mrf.mxu0
    %v130 = vadd.f32 %v110, %v129
    %131 = vmatmul.f32.gmra.mxu0 %v91
    %v132 = vpop.f32.mrf.mxu0
    %v133 = vadd.f32 %v110, %v132
    %134 = vdwg.mxu0
    %v135 = vmul.f32 %v130, %v130
    %v136 = vmul.f32 %v133, %v133
    %v137 = vmul.f32 %v130, %v135
    %v138 = vmul.f32 %v133, %v136
    %v139 = vmul.f32 %v137, 0.044715
    %v140 = vmul.f32 %v138, 0.044715
    %v141 = vadd.f32 %v130, %v139
    %v142 = vadd.f32 %v133, %v140
    %v143 = vmul.f32 %v141, 0.7978846
    %v144 = vmul.f32 %v142, 0.7978846
    %v145 = vtanh.pop %v143
    %v146 = vtanh.pop %v144
    %v147 = vadd.f32 %v145, 1.0
    %v148 = vadd.f32 %v146, 1.0
    %v149 = vmul.f32 %v147, 0.5
    %v150 = vmul.f32 %v148, 0.5
    %v151 = vmul.f32 %v130, %v149
    %v152 = vmul.f32 %v133, %v150
    %153 = vst [vmem:[#allocation2] sm:$0xff] %v151
    %154 = vst [vmem:[#allocation2 + $0x8] sm:$0xff] %v152
    %v155 = vld [vmem:[#allocation2] sm:$0xff]
    %v156 = vld [vmem:[#allocation2 + $0x8] sm:$0xff]
    %v157 = vld [vmem:[#allocation8] sm:$0xff]
    %v158 = vld [vmem:[#allocation8 + $0x8] sm:$0xff]
    %v159 = vld [vmem:[#allocation8 + $0x10] sm:$0xff]
    %v160 = vld [vmem:[#allocation8 + $0x18] sm:$0xff]
    %v161 = vld [vmem:[#allocation8 + $0x20] sm:$0xff]
    %v162 = vld [vmem:[#allocation8 + $0x28] sm:$0xff]
    %v163 = vld [vmem:[#allocation8 + $0x30] sm:$0xff]
    %v164 = vld [vmem:[#allocation8 + $0x38] sm:$0xff]
    %v165 = vld [vmem:[#allocation8 + $0x40] sm:$0xff]
    %v166 = vld [vmem:[#allocation8 + $0x48] sm:$0xff]
    %v167 = vld [vmem:[#allocation8 + $0x50] sm:$0xff]
    %v168 = vld [vmem:[#allocation8 + $0x58] sm:$0xff]
    %v169 = vld [vmem:[#allocation8 + $0x60] sm:$0xff]
    %v170 = vld [vmem:[#allocation8 + $0x68] sm:$0xff]
    %v171 = vld [vmem:[#allocation8 + $0x70] sm:$0xff]
    %v172 = vld [vmem:[#allocation8 + $0x78] sm:$0xff]
    %v173 = vld [vmem:[%s4] sm:$0x1]
    %v175 = vperm.slane %v173, 0
    %177 = vmatpush.msra.mxu0 %v172
    %178 = vmatpush.msra.mxu0 %v171
    %179 = vmatpush.msra.mxu0 %v170
    %180 = vmatpush.msra.mxu0 %v169
    %181 = vmatpush.msra.mxu0 %v168
    %182 = vmatpush.msra.mxu0 %v167
    %183 = vmatpush.msra.mxu0 %v166
    %184 = vmatpush.msra.mxu0 %v165
    %185 = vmatpush.msra.mxu0 %v164
    %186 = vmatpush.msra.mxu0 %v163
    %187 = vmatpush.msra.mxu0 %v162
    %188 = vmatpush.msra.mxu0 %v161
    %189 = vmatpush.msra.mxu0 %v160
    %190 = vmatpush.msra.mxu0 %v159
    %191 = vmatpush.msra.mxu0 %v158
    %192 = vmatpush.msra.mxu0 %v157
    %193 = vmatmul.f32.gmra.mxu0 %v155
    %v194 = vpop.f32.mrf.mxu0
    %v195 = vadd.f32 %v175, %v194
    %196 = vmatmul.f32.gmra.mxu0 %v156
    %v197 = vpop.f32.mrf.mxu0
    %v198 = vadd.f32 %v175, %v197
    %199 = vdwg.mxu0
    %v200 = vmul.f32 %v195, %v195
    %v201 = vmul.f32 %v198, %v198
    %v202 = vmul.f32 %v195, %v200
    %v203 = vmul.f32 %v198, %v201
    %v204 = vmul.f32 %v202, 0.044715
    %v205 = vmul.f32 %v203, 0.044715
    %v206 = vadd.f32 %v195, %v204
    %v207 = vadd.f32 %v198, %v205
    %v208 = vmul.f32 %v206, 0.7978846
    %v209 = vmul.f32 %v207, 0.7978846
    %v210 = vtanh.pop %v208
    %v211 = vtanh.pop %v209
    %v212 = vadd.f32 %v210, 1.0
    %v213 = vadd.f32 %v211, 1.0
    %v214 = vmul.f32 %v212, 0.5
    %v215 = vmul.f32 %v213, 0.5
    %v216 = vmul.f32 %v195, %v214
    %v217 = vmul.f32 %v198, %v215
    %218 = vst [vmem:[#allocation2] sm:$0xff] %v216
    %219 = vst [vmem:[#allocation2 + $0x8] sm:$0xff] %v217
    %v220 = vld [vmem:[#allocation2] sm:$0xff]
    %v221 = vld [vmem:[#allocation2 + $0x8] sm:$0xff]
    %v222 = vld [vmem:[#allocation9] sm:$0xff]
    %v223 = vld [vmem:[#allocation9 + $0x8] sm:$0xff]
    %v224 = vld [vmem:[#allocation9 + $0x10] sm:$0xff]
    %v225 = vld [vmem:[#allocation9 + $0x18] sm:$0xff]
    %v226 = vld [vmem:[#allocation9 + $0x20] sm:$0xff]
    %v227 = vld [vmem:[#allocation9 + $0x28] sm:$0xff]
    %v228 = vld [vmem:[#allocation9 + $0x30] sm:$0xff]
    %v229 = vld [vmem:[#allocation9 + $0x38] sm:$0xff]
    %v230 = vld [vmem:[#allocation9 + $0x40] sm:$0xff]
    %v231 = vld [vmem:[#allocation9 + $0x48] sm:$0xff]
    %v232 = vld [vmem:[#allocation9 + $0x50] sm:$0xff]
    %v233 = vld [vmem:[#allocation9 + $0x58] sm:$0xff]
    %v234 = vld [vmem:[#allocation9 + $0x60] sm:$0xff]
    %v235 = vld [vmem:[#allocation9 + $0x68] sm:$0xff]
    %v236 = vld [vmem:[#allocation9 + $0x70] sm:$0xff]
    %v237 = vld [vmem:[#allocation9 + $0x78] sm:$0xff]
    %v238 = vld [vmem:[%s6] sm:$0x1]
    %v240 = vperm.slane %v238, 0
    %242 = vmatpush.msra.mxu0 %v237
    %243 = vmatpush.msra.mxu0 %v236
    %244 = vmatpush.msra.mxu0 %v235
    %245 = vmatpush.msra.mxu0 %v234
    %246 = vmatpush.msra.mxu0 %v233
    %247 = vmatpush.msra.mxu0 %v232
    %248 = vmatpush.msra.mxu0 %v231
    %249 = vmatpush.msra.mxu0 %v230
    %250 = vmatpush.msra.mxu0 %v229
    %251 = vmatpush.msra.mxu0 %v228
    %252 = vmatpush.msra.mxu0 %v227
    %253 = vmatpush.msra.mxu0 %v226
    %254 = vmatpush.msra.mxu0 %v225
    %255 = vmatpush.msra.mxu0 %v224
    %256 = vmatpush.msra.mxu0 %v223
    %257 = vmatpush.msra.mxu0 %v222
    %258 = vmatmul.f32.gmra.mxu0 %v220
    %v259 = vpop.f32.mrf.mxu0
    %v260 = vadd.f32 %v240, %v259
    %261 = vmatmul.f32.gmra.mxu0 %v221
    %v262 = vpop.f32.mrf.mxu0
    %v263 = vadd.f32 %v240, %v262
    %264 = vdwg.mxu0
    %265 = vst [vmem:[#allocation11] sm:$0xff] %v260
    %266 = vst [vmem:[#allocation11 + $0x8] sm:$0xff] %v263
    // Predicated region
    $region46: #{tpu_custom_call.1} parent=1 // pred_check
      _
    $region47: #{tpu_custom_call.1} parent=1 // pred_check_branch
      %268 = sbr.rel (0) target = $region49
    $region48: #{tpu_custom_call.1} parent=1 // pred_region
      %270 = vsyncadd [#allocation5], 0
      %s271 = sshll.u32 [#allocation11], 4
      %s272 = int_to_ptr.vmem [resolvable:$true] %s271
      %s273 = sshll.u32 %s7, 4
      %s274 = int_to_ptr.hbm [resolvable:$true] %s273
      %279 = dma.vmem_to_hbm [thread:$0]  %s272, 256, %s274, [#allocation5], 128, 128, 8
    $region49: #{tpu_custom_call.1} parent=1 // pred_fallthru
      _
    // Predicated region
    $region50: #{tpu_custom_call.1} parent=1 // pred_check
      _
    $region51: #{tpu_custom_call.1} parent=1 // pred_check_branch
      %281 = sbr.rel (0) target = $region53
    $region52: #{tpu_custom_call.1} parent=1 // pred_region
      %283 = dma.done [#allocation5], 256
    $region53: #{tpu_custom_call.1} parent=1 // pred_fallthru
      _
    %284 = vsyncpa [#allocation4], 1
    %285 = vsyncpa [#allocation7], 1
    %286 = vsyncpa [#allocation10], 1
    %287 = vsyncpa [#allocation5], 1

</llo_original>
